<compile_context>
chip_gen: v5e
topology: v5e:2x2
jax: 0.10.0
libtpu: 0.0.40
codegen_flags: <defaults>
</compile_context>

<pallas_src>
import functools

import jax
import jax.numpy as jnp
from jax.experimental import pallas as pl
from jax.experimental.pallas import tpu as pltpu


def _ce_kernel(logits_ref, tgt_ref, out_ref, *, total_rows, ignore_index):
    """One batch tile: emit a (1, 8, 128) block holding this tile's partial
    loss sum (sublane 0) and valid-row count (sublane 1)."""
    i = pl.program_id(0)

    # DMA happens in the source dtype; widen to f32 only inside the kernel.
    x = logits_ref[...].astype(jnp.float32)          # (TB, C)
    tb, c = x.shape
    tgt = tgt_ref[...]                               # (TB, 1) int32

    # Row validity: inside the real batch (last tile may be padded) AND a real
    # (non-ignored, in-range) class index.
    row = jax.lax.broadcasted_iota(jnp.int32, (tb, 1), 0) + i * tb
    valid = (row < total_rows) & (tgt != ignore_index) & (tgt >= 0) & (tgt < c)

    # Numerically-stable log-sum-exp per row.  No full-tile neutralization:
    # all reductions are per-row, and the final per-row select zeroes
    # invalid/padded rows, so garbage stays confined to its own row.
    m = jnp.max(x, axis=-1, keepdims=True)           # (TB, 1)
    xm = x - m
    lse = jnp.log(jnp.sum(jnp.exp(xm), axis=-1, keepdims=True)) + m

    # Target logit via lane-iota select on the already-shifted tensor
    # (no fp32 one-hot mask, no extra full-tile multiply).
    col = jax.lax.broadcasted_iota(jnp.int32, (tb, c), 1)
    tgt_shift = jnp.sum(jnp.where(col == tgt, xm, 0.0), axis=-1, keepdims=True)

    losses = jnp.where(valid, lse - (tgt_shift + m), 0.0)   # (TB, 1)

    tile_sum = jnp.sum(losses)
    tile_cnt = jnp.sum(valid.astype(jnp.float32))

    # Lane-dense (1, 8, 128) partial block: sublane 0 = loss sum,
    # sublane 1 = valid count, rest zero.  Unmasked full-block store.
    sub = jax.lax.broadcasted_iota(jnp.int32, (1, 8, 128), 1)
    out_ref[...] = jnp.where(sub == 0, tile_sum,
                             jnp.where(sub == 1, tile_cnt, 0.0))


def _vmem_budget():
    """(per-buffer logits-tile budget, scoped vmem_limit_bytes), generation-aware."""
    vmem_bytes = None
    try:
        info = pltpu.get_tpu_info()
        vmem_bytes = int(getattr(info, "vmem_capacity_bytes"))
    except Exception:
        vmem_bytes = None
    if vmem_bytes is None or vmem_bytes <= 96 * 1024 * 1024:
        # v7x-class: 64 MiB physical VMEM per TC (also the safe unknown default).
        return 8 * 1024 * 1024, 40 * 1024 * 1024
    # v5e / v6e: 128 MiB physical VMEM.
    return 14 * 1024 * 1024, 64 * 1024 * 1024


def _pick_block_b(B, C, itemsize):
    """Batch tile size chosen purely by bytes: keep 2 double-buffered (TB, C)
    logit tiles comfortably inside the scoped VMEM limit for this generation."""
    per_buffer_budget, vmem_limit = _vmem_budget()
    tb = per_buffer_budget // max(1, C * itemsize)
    if tb >= B:
        return B, vmem_limit                           # full dim: always legal
    # Align to the dtype's native sublane packing (f32:8, bf16:16, int8/fp8:32).
    align = max(8, 32 // max(1, itemsize))
    tb = max(align, (tb // align) * align)
    return int(tb), vmem_limit


def _cross_entropy_xla(logits, targets, ignore_index):
    """Fused-XLA fallback for tiny problems (pallas_call overhead dominates)."""
    x = logits.astype(jnp.float32)
    logp = jax.nn.log_softmax(x, axis=-1)
    valid = (targets != ignore_index) & (targets >= 0) & (targets < x.shape[-1])
    safe_t = jnp.where(valid, targets, 0).astype(jnp.int32)
    nll = -jnp.take_along_axis(logp, safe_t[:, None], axis=-1)[:, 0]
    nll = jnp.where(valid, nll, 0.0)
    return jnp.sum(nll) / jnp.sum(valid.astype(jnp.float32))


def cross_entropy_loss(logits, targets, *, ignore_index=-100, block_b=None,
                       force_pallas=False):
    """logits: (B, C) float, targets: (B,) int -> scalar mean CE loss."""
    B, C = logits.shape
    itemsize = logits.dtype.itemsize

    # Dispatch-level win: tiny problems don't pay the kernel-launch + DMA cost.
    if not force_pallas and B * C * itemsize < (256 * 1024):
        return _cross_entropy_xla(logits, targets, ignore_index)

    if block_b is not None:
        tb = min(int(block_b), B)
        if tb < B and tb % 8 != 0:
            tb = max(8, (tb // 8) * 8)
        _, vmem_limit = _vmem_budget()
    else:
        tb, vmem_limit = _pick_block_b(B, C, itemsize)
        tb = min(tb, B)
    grid = pl.cdiv(B, tb)

    tgt2d = targets.astype(jnp.int32).reshape(B, 1)
    kernel = functools.partial(_ce_kernel, total_rows=B, ignore_index=ignore_index)

    # Per-tile partial outputs (independent blocks) -> grid axis is "parallel",
    # so v7x can shard tiles across both TensorCores; final reduce is in XLA.
    parts = pl.pallas_call(
        kernel,
        out_shape=jax.ShapeDtypeStruct((grid, 8, 128), jnp.float32),
        grid_spec=pltpu.PrefetchScalarGridSpec(
            num_scalar_prefetch=0,
            grid=(grid,),
            in_specs=[
                pl.BlockSpec((tb, C), lambda i: (i, 0)),   # logits tile (src dtype)
                pl.BlockSpec((tb, 1), lambda i: (i, 0)),   # targets tile
            ],
            out_specs=pl.BlockSpec((1, 8, 128), lambda i: (i, 0, 0)),
        ),
        compiler_params=pltpu.CompilerParams(
            dimension_semantics=("parallel",),
            vmem_limit_bytes=vmem_limit,
        ),
    )(logits, tgt2d)

    loss_sum = jnp.sum(parts[:, 0, 0])
    valid_cnt = jnp.sum(parts[:, 1, 0])
    # NOTE: all-ignored batch -> 0/0 = NaN, matching torch's empty-mean behavior.
    return loss_sum / valid_cnt


def cross_entropy_ref(logits, targets, ignore_index=-100):
    return _cross_entropy_xla(logits, targets, ignore_index)


if __name__ == "__main__":
    key = jax.random.PRNGKey(0)
    k1, k2, k3, k4, k5, k6 = jax.random.split(key, 6)

    # --- Test 1: small lane-aligned case, single tile, forced through Pallas.
    B1, C1 = 8, 128
    logits1 = jax.random.normal(k1, (B1, C1), dtype=jnp.float32)
    targets1 = jax.random.randint(k2, (B1,), 0, C1, dtype=jnp.int32)
    loss1 = cross_entropy_loss(logits1, targets1, force_pallas=True)
    jax.block_until_ready(loss1)
    ref1 = cross_entropy_ref(logits1, targets1)
    assert jnp.allclose(loss1, ref1, atol=1e-5, rtol=1e-5), (loss1, ref1)

    # --- Test 2: multi-tile grid (block_b=8, B=20 -> 3 tiles with a padded
    #             last tile), non-128-multiple class dim, ignore_index rows.
    B2, C2 = 20, 160
    logits2 = jax.random.normal(k3, (B2, C2), dtype=jnp.float32)
    targets2 = jax.random.randint(k4, (B2,), 0, C2, dtype=jnp.int32)
    targets2 = targets2.at[3].set(-100).at[17].set(-100)   # ignored rows
    loss2 = cross_entropy_loss(logits2, targets2, block_b=8, force_pallas=True)
    jax.block_until_ready(loss2)
    ref2 = cross_entropy_ref(logits2, targets2)
    assert jnp.allclose(loss2, ref2, atol=1e-5, rtol=1e-5), (loss2, ref2)

    # --- Test 3: bf16 logits travel through the DMA in bf16, widened in-kernel.
    B3, C3 = 16, 256
    logits3 = jax.random.normal(k5, (B3, C3), dtype=jnp.float32).astype(jnp.bfloat16)
    targets3 = jax.random.randint(k6, (B3,), 0, C3, dtype=jnp.int32)
    loss3 = cross_entropy_loss(logits3, targets3, force_pallas=True)
    jax.block_until_ready(loss3)
    ref3 = cross_entropy_ref(logits3, targets3)
    assert jnp.allclose(loss3, ref3, atol=1e-4, rtol=1e-4), (loss3, ref3)

    print("KERNEL_OK")
</pallas_src>

<mosaic_0001>
module attributes {stable_mosaic.version = 11 : i64} {
  func.func @_ce_kernel(%arg0: i32, %arg1: memref<8x128xf32, #tpu.memory_space<vmem>>, %arg2: memref<8x1xi32, #tpu.memory_space<vmem>>, %arg3: memref<1x8x128xf32, #tpu.memory_space<vmem>>) attributes {dimension_semantics = [#tpu.dimension_semantics<parallel>], iteration_bounds = array<i64: 1>, scalar_prefetch = 0 : i64, scratch_operands = 0 : i64, tpu.core_type = #tpu.core_type<tc>, window_params = [{transform_indices = @transform_0, window_bounds = array<i64: 8, 128>}, {transform_indices = @transform_1, window_bounds = array<i64: 8, 1>}, {transform_indices = @transform_2, window_bounds = array<i64: 1, 8, 128>}]} {
    %c0 = arith.constant 0 : index
    %c0_0 = arith.constant 0 : index
    %0 = vector.load %arg1[%c0, %c0_0] : memref<8x128xf32, #tpu.memory_space<vmem>>, vector<8x128xf32>
    %c0_1 = arith.constant 0 : index
    %c0_2 = arith.constant 0 : index
    %1 = vector.load %arg2[%c0_1, %c0_2] : memref<8x1xi32, #tpu.memory_space<vmem>>, vector<8x1xi32>
    %2 = tpu.iota {dimensions = array<i32: 0>} : vector<8x1xi32>
    %c8_i32 = arith.constant 8 : i32
    %3 = arith.muli %arg0, %c8_i32 : i32
    %4 = vector.broadcast %3 : i32 to vector<8x1xi32>
    %5 = arith.addi %2, %4 : vector<8x1xi32>
    %c8_i32_3 = arith.constant 8 : i32
    %6 = vector.broadcast %c8_i32_3 : i32 to vector<8x1xi32>
    %7 = arith.cmpi slt, %5, %6 : vector<8x1xi32>
    %c-100_i32 = arith.constant -100 : i32
    %8 = vector.broadcast %c-100_i32 : i32 to vector<8x1xi32>
    %9 = arith.cmpi ne, %1, %8 : vector<8x1xi32>
    %10 = arith.andi %7, %9 : vector<8x1xi1>
    %c0_i32 = arith.constant 0 : i32
    %11 = vector.broadcast %c0_i32 : i32 to vector<8x1xi32>
    %12 = arith.cmpi sge, %1, %11 : vector<8x1xi32>
    %13 = arith.andi %10, %12 : vector<8x1xi1>
    %c128_i32 = arith.constant 128 : i32
    %14 = vector.broadcast %c128_i32 : i32 to vector<8x1xi32>
    %15 = arith.cmpi slt, %1, %14 : vector<8x1xi32>
    %16 = arith.andi %13, %15 : vector<8x1xi1>
    %cst = arith.constant dense<0xFF800000> : vector<8xf32>
    %17 = vector.multi_reduction <maximumf>, %0, %cst [1] : vector<8x128xf32> to vector<8xf32>
    %18 = vector.shape_cast %17 : vector<8xf32> to vector<8x1xf32>
    %19 = vector.broadcast %18 : vector<8x1xf32> to vector<8x128xf32>
    %20 = arith.subf %0, %19 : vector<8x128xf32>
    %21 = math.exp %20 : vector<8x128xf32>
    %cst_4 = arith.constant dense<0.000000e+00> : vector<8xf32>
    %22 = vector.multi_reduction <add>, %21, %cst_4 [1] : vector<8x128xf32> to vector<8xf32>
    %23 = vector.shape_cast %22 : vector<8xf32> to vector<8x1xf32>
    %24 = math.log %23 : vector<8x1xf32>
    %25 = arith.addf %24, %18 : vector<8x1xf32>
    %26 = tpu.iota {dimensions = array<i32: 1>} : vector<8x128xi32>
    %27 = vector.broadcast %1 : vector<8x1xi32> to vector<8x128xi32>
    %28 = arith.cmpi eq, %26, %27 : vector<8x128xi32>
    %cst_5 = arith.constant 0.000000e+00 : f32
    %29 = vector.broadcast %cst_5 : f32 to vector<8x128xf32>
    %30 = arith.select %28, %20, %29 : vector<8x128xi1>, vector<8x128xf32>
    %cst_6 = arith.constant dense<0.000000e+00> : vector<8xf32>
    %31 = vector.multi_reduction <add>, %30, %cst_6 [1] : vector<8x128xf32> to vector<8xf32>
    %32 = vector.shape_cast %31 : vector<8xf32> to vector<8x1xf32>
    %33 = arith.addf %32, %18 : vector<8x1xf32>
    %34 = arith.subf %25, %33 : vector<8x1xf32>
    %cst_7 = arith.constant 0.000000e+00 : f32
    %35 = vector.broadcast %cst_7 : f32 to vector<8x1xf32>
    %36 = arith.select %16, %34, %35 : vector<8x1xi1>, vector<8x1xf32>
    %37 = vector.shape_cast %36 : vector<8x1xf32> to vector<1x8x1xf32>
    %cst_8 = arith.constant dense<0.000000e+00> : vector<1xf32>
    %38 = vector.multi_reduction <add>, %37, %cst_8 [1, 2] : vector<1x8x1xf32> to vector<1xf32>
    %39 = vector.shape_cast %38 : vector<1xf32> to vector<1x1x1xf32>
    %40 = vector.extract %39[0, 0, 0] : f32 from vector<1x1x1xf32>
    %41 = arith.extui %16 : vector<8x1xi1> to vector<8x1xi32>
    %42 = arith.sitofp %41 : vector<8x1xi32> to vector<8x1xf32>
    %43 = vector.shape_cast %42 : vector<8x1xf32> to vector<1x8x1xf32>
    %cst_9 = arith.constant dense<0.000000e+00> : vector<1xf32>
    %44 = vector.multi_reduction <add>, %43, %cst_9 [1, 2] : vector<1x8x1xf32> to vector<1xf32>
    %45 = vector.shape_cast %44 : vector<1xf32> to vector<1x1x1xf32>
    %46 = vector.extract %45[0, 0, 0] : f32 from vector<1x1x1xf32>
    %47 = tpu.iota {dimensions = array<i32: 1>} : vector<1x8x128xi32>
    %c0_i32_10 = arith.constant 0 : i32
    %48 = vector.broadcast %c0_i32_10 : i32 to vector<1x8x128xi32>
    %49 = arith.cmpi eq, %47, %48 : vector<1x8x128xi32>
    %c1_i32 = arith.constant 1 : i32
    %50 = vector.broadcast %c1_i32 : i32 to vector<1x8x128xi32>
    %51 = arith.cmpi eq, %47, %50 : vector<1x8x128xi32>
    %cst_11 = arith.constant 0.000000e+00 : f32
    %52 = vector.broadcast %46 : f32 to vector<1x8x128xf32>
    %53 = vector.broadcast %cst_11 : f32 to vector<1x8x128xf32>
    %54 = arith.select %51, %52, %53 : vector<1x8x128xi1>, vector<1x8x128xf32>
    %55 = vector.broadcast %40 : f32 to vector<1x8x128xf32>
    %56 = arith.select %49, %55, %54 : vector<1x8x128xi1>, vector<1x8x128xf32>
    %c0_12 = arith.constant 0 : index
    %c0_13 = arith.constant 0 : index
    %c0_14 = arith.constant 0 : index
    %57 = vector.load %arg3[%c0_12, %c0_13, %c0_14] : memref<1x8x128xf32, #tpu.memory_space<vmem>>, vector<1x8x128xf32>
    tpu.vector_store %arg3[%c0_12, %c0_13, %c0_14], %56 {strides = array<i32>} : memref<1x8x128xf32, #tpu.memory_space<vmem>>, vector<1x8x128xf32>,
    return
  }
  func.func @transform_0(%arg0: i32) -> (i32, i32) {
    %c0_i32 = arith.constant 0 : i32
    %c0_i32_0 = arith.constant 0 : i32
    return %arg0, %c0_i32 : i32, i32
  }
  func.func @transform_1(%arg0: i32) -> (i32, i32) {
    %c0_i32 = arith.constant 0 : i32
    %c0_i32_0 = arith.constant 0 : i32
    return %arg0, %c0_i32 : i32, i32
  }
  func.func @transform_2(%arg0: i32) -> (i32, i32, i32) {
    %c0_i32 = arith.constant 0 : i32
    %c0_i32_0 = arith.constant 0 : i32
    %c0_i32_1 = arith.constant 0 : i32
    return %arg0, %c0_i32, %c0_i32_0 : i32, i32, i32
  }
}

</mosaic_0001>

<llo_original>
// kernel: tpu_custom_call.1
$region0: #{tpu_custom_call.1}
  #allocation0 [shape = 'u32[]', space=smem, size = 0x4, offset = 0x4, fixed_abs, tag = 'smem constant byte address 0x4 - core index']
  #allocation1 [shape = 'u32[72,128]{1,0:T(1,128)}', space=vmem, size = 0x9000, scoped, tag = 'internal scratch']
  %s0 = inlined_call_operand.vmem [shape: f32[8,128], index: 0, kind: input, shape index: {}]
  %s1 = inlined_call_operand.vmem [shape: s32[8,1], index: 1, kind: input, shape index: {}]
  %s2 = inlined_call_operand.hbm [shape: f32[1,8,128], index: 2, kind: output, shape index: {}]
  %s3 = sld [smem:[#allocation0]]
  $region18: #{tpu_custom_call.1} parent=0
    _
  %s5 = ssub.s32 1, %s3
  %s6 = scalar_select 0, %s5, %s3
  $region1: #{tpu_custom_call.1} parent=0
    #allocation2 [shape = 'u8[4096]{0}', space=vmem, size = 0x1000, scoped, tag = 'output window, operand 0, single buffered']
    #allocation3 [shape = 's32[1]{0}', space=sflag, size = 0x4, scoped, tag = 'scoped memory for tpu_custom_call.1']
    %7 = vsyncpa [#allocation3], 0
    // Predicated region
    $region2: #{tpu_custom_call.1} parent=1 // pred_check
      _
    $region3: #{tpu_custom_call.1} parent=1 // pred_check_branch
      %9 = sbr.rel (0) target = $region5
    $region4: #{tpu_custom_call.1} parent=1 // pred_region
      _
    $region5: #{tpu_custom_call.1} parent=1 // pred_fallthru
      _
    // Predicated region
    $region6: #{tpu_custom_call.1} parent=1 // pred_check
      _
    $region7: #{tpu_custom_call.1} parent=1 // pred_check_branch
      %11 = sbr.rel (0) target = $region9
    $region8: #{tpu_custom_call.1} parent=1 // pred_region
      _
    $region9: #{tpu_custom_call.1} parent=1 // pred_fallthru
      _
    %v12 = vld [vmem:[%s0] sm:$0xff]
    %v13 = vld [vmem:[%s1] sm:$0xff]
    %v14 = vlaneseq
    %v15 = vshrl.u32 %v14, 7
    %s16 = smul.u32 0, 8
    %v17 = vstv %s16
    %v18 = vadd.s32 %v15, %v17
    %vm19 = vcmp.lt.s32.totalorder %v18, 8
    %vm20 = vcmp.ne.s32.totalorder %v13, 4294967196
    %vm21 = vmand %vm19, %vm20
    %vm22 = vcmp.ge.s32.totalorder %v13, 0
    %vm23 = vmand %vm21, %vm22
    %vm24 = vcmp.lt.s32.totalorder %v13, 128
    %vm25 = vmand %vm23, %vm24
    %26 = vmax.xlane.f32.xlu0 %v12
    %v27 = vpop.xlane.xlu0 %26
    %v28 = vsub.f32 %v12, %v27
    %v29 = vmul.f32 %v28, 1.442695
    %v30 = vpow.pop %v29
    %31 = vadd.xlane.f32.xlu0 %v30
    %v32 = vpop.xlane.xlu0 %31
    %v33 = vlog2.pop %v32
    %v34 = vmul.f32 %v33, 0.6931472
    %v35 = vadd.f32 %v34, %v27
    %v36 = vlaneseq
    %v37 = vand.u32 %v36, 127
    %38 = vset.pattern.permute.xlu0 0
    %39 = vperm.xlu0 %38, %v13
    %v40 = vpop.permute.xlu0 %39
    %vm41 = vcmp.eq.s32.totalorder %v37, %v40
    %v42 = vsel %vm41, %v28, 0.0
    %43 = vadd.xlane.f32.xlu0 %v42
    %v44 = vpop.xlane.xlu0 %43
    %v45 = vadd.f32 %v44, %v27
    %v46 = vsub.f32 %v35, %v45
    %v47 = vsel %vm25, %v46, 0.0
    %vm48 = vcmask 7168
    %v49 = vsel %vm48, %v47, 0.0
    %50 = vadd.xlane.f32.xlu0 %v49
    %v51 = vpop.xlane.xlu0 %50
    %v52 = vrot.slane %v51, 4
    %v53 = vadd.f32 %v51, %v52
    %v54 = vrot.slane %v53, 2
    %v55 = vadd.f32 %v53, %v54
    %v56 = vrot.slane %v55, 1
    %v57 = vadd.f32 %v55, %v56
    %s58 = vtos %v57
    %v59 = vsel %vm25, 1, 0
    %v60 = vcvt.s32.f32 %v59
    %v61 = vsel %vm48, %v60, 0.0
    %62 = vadd.xlane.f32.xlu0 %v61
    %v63 = vpop.xlane.xlu0 %62
    %v64 = vrot.slane %v63, 4
    %v65 = vadd.f32 %v63, %v64
    %v66 = vrot.slane %v65, 2
    %v67 = vadd.f32 %v65, %v66
    %v68 = vrot.slane %v67, 1
    %v69 = vadd.f32 %v67, %v68
    %s70 = vtos %v69
    %vm71 = vcmp.eq.s32.totalorder %v15, 0
    %vm72 = vcmp.eq.s32.totalorder %v15, 1
    %v73 = vstv %s70
    %v74 = vsel %vm72, %v73, 0.0
    %v75 = vstv %s58
    %v76 = vsel %vm71, %v75, %v74
    %77 = vst [vmem:[#allocation2] sm:$0xff] %v76
    // Predicated region
    $region10: #{tpu_custom_call.1} parent=1 // pred_check
      _
    $region11: #{tpu_custom_call.1} parent=1 // pred_check_branch
      %79 = sbr.rel (0) target = $region13
    $region12: #{tpu_custom_call.1} parent=1 // pred_region
      %81 = vsyncadd [#allocation3], 0
      %s83 = sshll.u32 [#allocation2], 4
      %s84 = int_to_ptr.vmem [resolvable:$true] %s83
      %s85 = sshll.u32 %s2, 4
      %s86 = int_to_ptr.hbm [resolvable:$true] %s85
      %88 = dma.vmem_to_hbm [thread:$0]  %s84, 128, %s86, [#allocation3]
    $region13: #{tpu_custom_call.1} parent=1 // pred_fallthru
      _
    // Predicated region
    $region14: #{tpu_custom_call.1} parent=1 // pred_check
      _
    $region15: #{tpu_custom_call.1} parent=1 // pred_check_branch
      %90 = sbr.rel (0) target = $region17
    $region16: #{tpu_custom_call.1} parent=1 // pred_region
      %92 = dma.done [#allocation3], 128
    $region17: #{tpu_custom_call.1} parent=1 // pred_fallthru
      _
    %93 = vsyncpa [#allocation3], 1

</llo_original>
